<compile_context>
chip_gen: v6e
topology: v6e:2x2x1
jax: 0.10.0
libtpu: 0.0.40
codegen_flags: <defaults>
</compile_context>

<pallas_src>
import functools
import math

import jax
import jax.numpy as jnp
from jax.experimental import pallas as pl
from jax.experimental.pallas import tpu as pltpu


# --------------------------------------------------------------------------- #
# hardware-aware knobs
# --------------------------------------------------------------------------- #
@functools.lru_cache(maxsize=None)
def _vmem_capacity_bytes():
    try:
        info = pltpu.get_tpu_info()
        for name in ("vmem_capacity_bytes", "vmem_size_bytes", "vmem_bytes"):
            v = getattr(info, name, None)
            if v:
                return int(v)
    except Exception:
        pass
    return 128 * 1024 * 1024  # assume v5e/v6e-class if probing fails


@functools.lru_cache(maxsize=None)
def _vmem_limit_bytes():
    cap = _vmem_capacity_bytes()
    if cap <= 64 * 1024 * 1024:                 # v7x: 64 MiB physical per TC -> leave headroom
        return 48 * 1024 * 1024
    return min(100 * 1024 * 1024, int(cap * 0.8))   # v5e/v6e: 128 MiB physical


@functools.lru_cache(maxsize=None)
def _default_row_tile():
    return 256 if _vmem_capacity_bytes() <= 64 * 1024 * 1024 else 512


def _compiler_params(dimension_semantics):
    return pltpu.CompilerParams(dimension_semantics=dimension_semantics,
                                vmem_limit_bytes=_vmem_limit_bytes())


# --------------------------------------------------------------------------- #
# helpers
# --------------------------------------------------------------------------- #
def _round_up(x, m):
    return (x + m - 1) // m * m


def _row_tiling(m, requested):
    """Pick a row tile and padded row count (tile divides padded rows)."""
    if m <= requested:
        tile = _round_up(max(m, 1), 8)   # single block == full (padded) array -> always legal
        return tile, tile
    tile = _round_up(requested, 16)      # multiple of 16: legal sublane tiling for bf16 refs too
    return tile, _round_up(m, tile)


def _pad_rows(x2d, m_pad):
    m = x2d.shape[0]
    if m_pad == m:
        return x2d
    return jnp.pad(x2d, ((0, m_pad - m), (0, 0)))


_SINGLE_BUFFER_OK = None


def _single_buffer_supported():
    """Probe (once) whether this Pallas build accepts pipeline_mode=pl.Buffered(1)."""
    global _SINGLE_BUFFER_OK
    if _SINGLE_BUFFER_OK is None:
        try:
            spec = pl.BlockSpec((8, 128), lambda i: (0, 0), pipeline_mode=pl.Buffered(1))

            def _probe_kernel(x_ref, o_ref):
                o_ref[...] = x_ref[...] + 1.0

            x = jnp.zeros((8, 128), jnp.float32)
            out = pl.pallas_call(
                _probe_kernel,
                out_shape=jax.ShapeDtypeStruct((8, 128), jnp.float32),
                grid=(2,),
                in_specs=[spec],
                out_specs=pl.BlockSpec((8, 128), lambda i: (0, 0)),
            )(x)
            jax.block_until_ready(out)
            _SINGLE_BUFFER_OK = True
        except Exception:
            _SINGLE_BUFFER_OK = False
    return _SINGLE_BUFFER_OK


def _resident_spec(block_shape, index_map):
    """BlockSpec for an invariant operand (constant index_map); single-buffered when supported."""
    if _single_buffer_supported():
        return pl.BlockSpec(block_shape, index_map, pipeline_mode=pl.Buffered(1))
    return pl.BlockSpec(block_shape, index_map)


def _erf_f32(x, fast_math):
    # Abramowitz & Stegun 7.1.26 polynomial erf: |abs err| <= 1.5e-7 (~f32 eps).
    a1, a2, a3, a4, a5 = 0.254829592, -0.284496736, 1.421413741, -1.453152027, 1.061405429
    p = 0.3275911
    sgn = jnp.where(x < 0.0, -1.0, 1.0)
    z = jnp.abs(x)
    denom = 1.0 + p * z
    if fast_math:
        t = pl.reciprocal(denom, approx=True)   # EUP slot instead of a VPU divide
    else:
        t = 1.0 / denom
    poly = ((((a5 * t + a4) * t + a3) * t + a2) * t + a1) * t
    return sgn * (1.0 - poly * jnp.exp(-z * z))


def _gelu_f32(x, fast_math):
    # Exact (erf-based) BERT gelu, computed in f32.
    return x * 0.5 * (1.0 + _erf_f32(x * (1.0 / math.sqrt(2.0)), fast_math))


def _layernorm_f32(x, gamma, beta, eps):
    u = jnp.mean(x, axis=-1, keepdims=True)
    d = x - u
    var = jnp.mean(d * d, axis=-1, keepdims=True)
    xn = d * jax.lax.rsqrt(var + eps)            # rsqrt -> EUP slot (free vs VPU divide)
    return gamma * xn + beta


def _choose_head_block(num_heads, sq, sk, d_head, esz, budget):
    """Largest divisor of num_heads whose per-step VMEM footprint fits the budget."""
    for hb in range(num_heads, 0, -1):
        if num_heads % hb:
            continue
        scores = hb * sq * sk * 4 * 2                       # s and p tiles, f32
        qkv_io = 2 * hb * (sq + 2 * sk) * d_head * esz      # double-buffered q/k/v tiles
        out_io = 2 * hb * sq * d_head * esz
        if scores + qkv_io + out_io <= budget:
            return hb
    return 1


# --------------------------------------------------------------------------- #
# kernels (inputs already in compute dtype; accumulation / LN math in f32)
# --------------------------------------------------------------------------- #
def _dense_kernel(x_ref, w_ref, b_ref, o_ref):
    acc = jnp.dot(x_ref[...], w_ref[...], preferred_element_type=jnp.float32)
    o_ref[...] = (acc + b_ref[...]).astype(o_ref.dtype)


def _attention_kernel(q_ref, k_ref, v_ref, *rest, has_mask, fast_math):
    if has_mask:
        m_ref, o_ref = rest
    else:
        (o_ref,) = rest
    q = q_ref[...]                               # (hb, Sq, D) — 1/sqrt(d) already folded into Wq
    k = k_ref[...]                               # (hb, Sk, D)
    v = v_ref[...]                               # (hb, Sk, D)
    s = jnp.einsum("hqd,hkd->hqk", q, k, preferred_element_type=jnp.float32)
    if has_mask:
        mval = m_ref[...].astype(jnp.float32)    # (mq, Sk) or (hb, Sq, Sk)
        if mval.ndim < s.ndim:
            mval = jnp.expand_dims(mval, 0)
        s = s + mval
    m = jnp.max(s, axis=-1, keepdims=True)
    p = jnp.exp(s - m)                           # unnormalized probs
    l = jnp.sum(p, axis=-1, keepdims=True)       # (hb, Sq, 1)
    ctx = jnp.einsum("hqk,hkd->hqd", p.astype(v.dtype), v,
                     preferred_element_type=jnp.float32)
    if fast_math:
        ctx = ctx * pl.reciprocal(l, approx=True)   # normalize the small (Sq, d) tensor, EUP recip
    else:
        ctx = ctx / l                               # exact path for f32 verification
    o_ref[...] = ctx.astype(o_ref.dtype)


def _dense_res_ln_kernel(x_ref, res_ref, w_ref, b_ref, g_ref, beta_ref, o_ref, *, eps):
    acc = jnp.dot(x_ref[...], w_ref[...], preferred_element_type=jnp.float32)
    acc = acc + b_ref[...]
    # dropout (eval mode) == identity
    acc = acc + res_ref[...].astype(jnp.float32)
    o_ref[...] = _layernorm_f32(acc, g_ref[...], beta_ref[...], eps).astype(o_ref.dtype)


def _ffn_kernel(x_ref, w1_ref, b1_ref, w2_ref, b2_ref, g_ref, beta_ref, o_ref, *,
                eps, fast_math):
    x = x_ref[...]                               # (tile, H) compute dtype
    h = jnp.dot(x, w1_ref[...], preferred_element_type=jnp.float32) + b1_ref[...]
    h = _gelu_f32(h, fast_math)                  # intermediate stays in VMEM / vregs
    y = jnp.dot(h.astype(w2_ref.dtype), w2_ref[...], preferred_element_type=jnp.float32)
    # dropout (eval mode) == identity
    y = y + b2_ref[...] + x.astype(jnp.float32)
    o_ref[...] = _layernorm_f32(y, g_ref[...], beta_ref[...], eps).astype(o_ref.dtype)


# --------------------------------------------------------------------------- #
# wrappers
# --------------------------------------------------------------------------- #
def dense(x, w, b, *, compute_dtype, row_tile=None):
    """y = x @ w + b, row tiled over batch*seq, weight resident in VMEM."""
    *lead, k_dim = x.shape
    n_dim = w.shape[-1]
    m = math.prod(lead)
    if row_tile is None:
        row_tile = _default_row_tile()
    tile, m_pad = _row_tiling(m, row_tile)
    x2 = _pad_rows(x.reshape(m, k_dim).astype(compute_dtype), m_pad)
    w = w.astype(compute_dtype)                      # no-op with prepared params
    b = b.reshape(1, n_dim).astype(jnp.float32)      # no-op with prepared params

    out = pl.pallas_call(
        _dense_kernel,
        out_shape=jax.ShapeDtypeStruct((m_pad, n_dim), compute_dtype),
        grid_spec=pltpu.PrefetchScalarGridSpec(
            num_scalar_prefetch=0,
            grid=(m_pad // tile,),
            in_specs=[
                pl.BlockSpec((tile, k_dim), lambda i: (i, 0)),
                _resident_spec((k_dim, n_dim), lambda i: (0, 0)),
                _resident_spec((1, n_dim), lambda i: (0, 0)),
            ],
            out_specs=pl.BlockSpec((tile, n_dim), lambda i: (i, 0)),
        ),
        compiler_params=_compiler_params(("parallel",)),
    )(x2, w, b)
    return out[:m].reshape(*lead, n_dim)


def multi_head_attention(q, k, v, mask, num_heads, *, compute_dtype, head_block=None):
    """softmax(q k^T + mask) v; scale assumed folded into q. One (batch, head-block) per step."""
    b_dim, sq, h_dim = q.shape
    sk = k.shape[1]
    d_head = h_dim // num_heads
    fast = compute_dtype != jnp.float32

    def split_heads(t, s):
        return t.reshape(b_dim, s, num_heads, d_head).transpose(0, 2, 1, 3).astype(compute_dtype)

    qh, kh, vh = split_heads(q, sq), split_heads(k, sk), split_heads(v, sk)

    esz = jnp.dtype(compute_dtype).itemsize
    if head_block is None:
        head_block = _choose_head_block(num_heads, sq, sk, d_head, esz,
                                        budget=_vmem_limit_bytes() // 2)
    n_hblk = num_heads // head_block

    in_specs = [
        pl.BlockSpec((None, head_block, sq, d_head), lambda b, h: (b, h, 0, 0)),
        pl.BlockSpec((None, head_block, sk, d_head), lambda b, h: (b, h, 0, 0)),
        pl.BlockSpec((None, head_block, sk, d_head), lambda b, h: (b, h, 0, 0)),
    ]
    operands = [qh, kh, vh]
    has_mask = mask is not None
    if has_mask:
        m4 = jnp.asarray(mask, jnp.float32)
        while m4.ndim < 4:
            m4 = m4[None]
        if m4.shape[1] == 1:
            # head-shared mask: keep it (B, mq, Sk) in HBM, broadcast over Sq/heads in-kernel.
            mq = sq if m4.shape[2] != 1 else 1
            m_arr = jnp.broadcast_to(m4, (b_dim, 1, mq, sk)).reshape(b_dim, mq, sk)
            in_specs.append(pl.BlockSpec((None, mq, sk), lambda b, h: (b, 0, 0)))
        else:
            # per-head mask: fall back to the full (B, nH, Sq, Sk) layout.
            m_arr = jnp.broadcast_to(m4, (b_dim, num_heads, sq, sk))
            in_specs.append(pl.BlockSpec((None, head_block, sq, sk), lambda b, h: (b, h, 0, 0)))
        operands.append(m_arr)

    out = pl.pallas_call(
        functools.partial(_attention_kernel, has_mask=has_mask, fast_math=fast),
        out_shape=jax.ShapeDtypeStruct((b_dim, num_heads, sq, d_head), compute_dtype),
        grid_spec=pltpu.PrefetchScalarGridSpec(
            num_scalar_prefetch=0,
            grid=(b_dim, n_hblk),
            in_specs=in_specs,
            out_specs=pl.BlockSpec((None, head_block, sq, d_head), lambda b, h: (b, h, 0, 0)),
        ),
        compiler_params=_compiler_params(("parallel", "parallel")),
    )(*operands)
    # (B, nH, Sq, D) -> (B, Sq, H)
    return out.transpose(0, 2, 1, 3).reshape(b_dim, sq, h_dim)


def dense_residual_layernorm(x, residual, w, b, gamma, beta, *, eps, compute_dtype,
                             row_tile=None):
    """LayerNorm(x @ w + b + residual) — BertSelfOutput / BertCrossOutput (eval-mode dropout)."""
    *lead, k_dim = x.shape
    n_dim = w.shape[-1]
    m = math.prod(lead)
    if row_tile is None:
        row_tile = _default_row_tile()
    tile, m_pad = _row_tiling(m, row_tile)
    x2 = _pad_rows(x.reshape(m, k_dim).astype(compute_dtype), m_pad)
    r2 = _pad_rows(residual.reshape(m, n_dim).astype(compute_dtype), m_pad)

    out = pl.pallas_call(
        functools.partial(_dense_res_ln_kernel, eps=eps),
        out_shape=jax.ShapeDtypeStruct((m_pad, n_dim), compute_dtype),
        grid_spec=pltpu.PrefetchScalarGridSpec(
            num_scalar_prefetch=0,
            grid=(m_pad // tile,),
            in_specs=[
                pl.BlockSpec((tile, k_dim), lambda i: (i, 0)),
                pl.BlockSpec((tile, n_dim), lambda i: (i, 0)),
                _resident_spec((k_dim, n_dim), lambda i: (0, 0)),
                _resident_spec((1, n_dim), lambda i: (0, 0)),
                _resident_spec((1, n_dim), lambda i: (0, 0)),
                _resident_spec((1, n_dim), lambda i: (0, 0)),
            ],
            out_specs=pl.BlockSpec((tile, n_dim), lambda i: (i, 0)),
        ),
        compiler_params=_compiler_params(("parallel",)),
    )(x2, r2, w.astype(compute_dtype), b.reshape(1, n_dim).astype(jnp.float32),
      gamma.reshape(1, n_dim).astype(jnp.float32), beta.reshape(1, n_dim).astype(jnp.float32))
    return out[:m].reshape(*lead, n_dim)


def ffn_residual_layernorm(x, w1, b1, w2, b2, gamma, beta, *, eps, compute_dtype,
                           row_tile=None):
    """LayerNorm(gelu(x@w1+b1)@w2 + b2 + x) — fused BertIntermediate + BertOutput."""
    *lead, h_dim = x.shape
    i_dim = w1.shape[-1]
    m = math.prod(lead)
    if row_tile is None:
        row_tile = _default_row_tile()
    tile, m_pad = _row_tiling(m, row_tile)
    x2 = _pad_rows(x.reshape(m, h_dim).astype(compute_dtype), m_pad)
    fast = compute_dtype != jnp.float32

    out = pl.pallas_call(
        functools.partial(_ffn_kernel, eps=eps, fast_math=fast),
        out_shape=jax.ShapeDtypeStruct((m_pad, h_dim), compute_dtype),
        grid_spec=pltpu.PrefetchScalarGridSpec(
            num_scalar_prefetch=0,
            grid=(m_pad // tile,),
            in_specs=[
                pl.BlockSpec((tile, h_dim), lambda i: (i, 0)),
                _resident_spec((h_dim, i_dim), lambda i: (0, 0)),
                _resident_spec((1, i_dim), lambda i: (0, 0)),
                _resident_spec((i_dim, h_dim), lambda i: (0, 0)),
                _resident_spec((1, h_dim), lambda i: (0, 0)),
                _resident_spec((1, h_dim), lambda i: (0, 0)),
                _resident_spec((1, h_dim), lambda i: (0, 0)),
            ],
            out_specs=pl.BlockSpec((tile, h_dim), lambda i: (i, 0)),
        ),
        compiler_params=_compiler_params(("parallel",)),
    )(x2, w1.astype(compute_dtype), b1.reshape(1, i_dim).astype(jnp.float32),
      w2.astype(compute_dtype), b2.reshape(1, h_dim).astype(jnp.float32),
      gamma.reshape(1, h_dim).astype(jnp.float32), beta.reshape(1, h_dim).astype(jnp.float32))
    return out[:m].reshape(*lead, h_dim)


# --------------------------------------------------------------------------- #
# parameter prep: cast / concat / scale-fold once, OUTSIDE the forward
# --------------------------------------------------------------------------- #
def prepare_bert_layer_params(params, num_heads, *, compute_dtype=jnp.bfloat16):
    h_dim = params["self"]["wq"].shape[0]
    scale = 1.0 / math.sqrt(h_dim // num_heads)

    def w_(x):
        return jnp.asarray(x).astype(compute_dtype)

    def v_(x):
        return jnp.asarray(x).reshape(1, -1).astype(jnp.float32)

    p_self, p_cross = params["self"], params["cross"]
    w_qkv = jnp.concatenate([p_self["wq"] * scale, p_self["wk"], p_self["wv"]], axis=1)
    b_qkv = jnp.concatenate([p_self["bq"] * scale, p_self["bk"], p_self["bv"]], axis=0)
    w_kv = jnp.concatenate([p_cross["wk"], p_cross["wv"]], axis=1)
    b_kv = jnp.concatenate([p_cross["bk"], p_cross["bv"]], axis=0)

    def out_block(p):
        return {"w": w_(p["w"]), "b": v_(p["b"]), "gamma": v_(p["gamma"]), "beta": v_(p["beta"])}

    return {
        "self_qkv": {"w": w_(w_qkv), "b": v_(b_qkv)},
        "self_out": out_block(params["self_out"]),
        "cross_q": {"w": w_(p_cross["wq"] * scale), "b": v_(p_cross["bq"] * scale)},
        "cross_kv": {"w": w_(w_kv), "b": v_(b_kv)},
        "cross_out": out_block(params["cross_out"]),
        "ffn": {"w1": w_(params["ffn"]["w1"]), "b1": v_(params["ffn"]["b1"]),
                "w2": w_(params["ffn"]["w2"]), "b2": v_(params["ffn"]["b2"]),
                "gamma": v_(params["ffn"]["gamma"]), "beta": v_(params["ffn"]["beta"])},
    }


# --------------------------------------------------------------------------- #
# BertLayer forward (eval mode, use_cache=False)
# --------------------------------------------------------------------------- #
def bert_layer_forward(prepared, hidden_states, attention_mask, video_feat,
                       cross_attention_masks=None, *, num_heads, row_tile=None, eps=1e-12):
    compute_dtype = prepared["self_qkv"]["w"].dtype
    h_dim = hidden_states.shape[-1]
    if row_tile is None:
        row_tile = _default_row_tile()

    # --- self attention ---------------------------------------------------- #
    qkv = dense(hidden_states, prepared["self_qkv"]["w"], prepared["self_qkv"]["b"],
                compute_dtype=compute_dtype, row_tile=row_tile)
    q, k, v = qkv[..., :h_dim], qkv[..., h_dim:2 * h_dim], qkv[..., 2 * h_dim:]
    ctx = multi_head_attention(q, k, v, attention_mask, num_heads, compute_dtype=compute_dtype)
    so = prepared["self_out"]
    attn_out = dense_residual_layernorm(ctx, hidden_states, so["w"], so["b"], so["gamma"],
                                        so["beta"], eps=eps, compute_dtype=compute_dtype,
                                        row_tile=row_tile)

    # --- cross attention (only when video features are present) ------------ #
    if video_feat is not None:
        cq, ckv, co = prepared["cross_q"], prepared["cross_kv"], prepared["cross_out"]
        qc = dense(attn_out, cq["w"], cq["b"], compute_dtype=compute_dtype, row_tile=row_tile)
        kvc = dense(video_feat, ckv["w"], ckv["b"], compute_dtype=compute_dtype, row_tile=row_tile)
        kc, vc = kvc[..., :h_dim], kvc[..., h_dim:]
        ctx_c = multi_head_attention(qc, kc, vc, cross_attention_masks, num_heads,
                                     compute_dtype=compute_dtype)
        attn_out = dense_residual_layernorm(ctx_c, attn_out, co["w"], co["b"], co["gamma"],
                                            co["beta"], eps=eps, compute_dtype=compute_dtype,
                                            row_tile=row_tile)

    # --- feed forward (intermediate + output, fused) ----------------------- #
    f = prepared["ffn"]
    return ffn_residual_layernorm(attn_out, f["w1"], f["b1"], f["w2"], f["b2"],
                                  f["gamma"], f["beta"], eps=eps,
                                  compute_dtype=compute_dtype, row_tile=row_tile)


# --------------------------------------------------------------------------- #
# pure-JAX reference (mirrors the PyTorch module, f32, exact erf gelu)
# --------------------------------------------------------------------------- #
def bert_layer_reference(params, hidden_states, attention_mask, video_feat,
                         cross_attention_masks, *, num_heads, eps=1e-12):
    h_dim = hidden_states.shape[-1]
    d_head = h_dim // num_heads

    def dense_ref(x, w, b):
        return jnp.einsum("bsi,io->bso", x.astype(jnp.float32), w.astype(jnp.float32)) + b

    def split_heads(x):
        b, s, _ = x.shape
        return x.reshape(b, s, num_heads, d_head).transpose(0, 2, 1, 3)

    def attention(q, k, v, mask):
        s = jnp.einsum("bhqd,bhkd->bhqk", q, k) / math.sqrt(d_head)
        if mask is not None:
            s = s + mask
        p = jax.nn.softmax(s, axis=-1)
        ctx = jnp.einsum("bhqk,bhkd->bhqd", p, v)
        b, h, sq, d = ctx.shape
        return ctx.transpose(0, 2, 1, 3).reshape(b, sq, h * d)

    def layer_norm(x, g, b):
        u = x.mean(-1, keepdims=True)
        s = ((x - u) ** 2).mean(-1, keepdims=True)
        return g * (x - u) / jnp.sqrt(s + eps) + b

    def gelu_exact(x):
        return x * 0.5 * (1.0 + jax.scipy.special.erf(x / math.sqrt(2.0)))

    p = params
    q = split_heads(dense_ref(hidden_states, p["self"]["wq"], p["self"]["bq"]))
    k = split_heads(dense_ref(hidden_states, p["self"]["wk"], p["self"]["bk"]))
    v = split_heads(dense_ref(hidden_states, p["self"]["wv"], p["self"]["bv"]))
    ctx = attention(q, k, v, attention_mask)
    attn_out = layer_norm(dense_ref(ctx, p["self_out"]["w"], p["self_out"]["b"]) + hidden_states,
                          p["self_out"]["gamma"], p["self_out"]["beta"])
    if video_feat is not None:
        qc = split_heads(dense_ref(attn_out, p["cross"]["wq"], p["cross"]["bq"]))
        kc = split_heads(dense_ref(video_feat, p["cross"]["wk"], p["cross"]["bk"]))
        vc = split_heads(dense_ref(video_feat, p["cross"]["wv"], p["cross"]["bv"]))
        ctx_c = attention(qc, kc, vc, cross_attention_masks)
        attn_out = layer_norm(
            dense_ref(ctx_c, p["cross_out"]["w"], p["cross_out"]["b"]) + attn_out,
            p["cross_out"]["gamma"], p["cross_out"]["beta"])
    inter = gelu_exact(dense_ref(attn_out, p["ffn"]["w1"], p["ffn"]["b1"]))
    return layer_norm(dense_ref(inter, p["ffn"]["w2"], p["ffn"]["b2"]) + attn_out,
                      p["ffn"]["gamma"], p["ffn"]["beta"])


# --------------------------------------------------------------------------- #
# deterministic parameter init
# --------------------------------------------------------------------------- #
def init_bert_layer_params(key, hidden_size, intermediate_size):
    keys = list(jax.random.split(key, 32))

    def pop():
        return keys.pop()

    def linear(n_in, n_out):
        w = jax.random.normal(pop(), (n_in, n_out), jnp.float32) * 0.02
        b = jax.random.normal(pop(), (n_out,), jnp.float32) * 0.02
        return w, b

    def layer_norm_params(n):
        g = 1.0 + 0.1 * jax.random.normal(pop(), (n,), jnp.float32)
        b = 0.1 * jax.random.normal(pop(), (n,), jnp.float32)
        return g, b

    h, i = hidden_size, intermediate_size
    wq, bq = linear(h, h); wk, bk = linear(h, h); wv, bv = linear(h, h)
    wo, bo = linear(h, h); g1, be1 = layer_norm_params(h)
    cwq, cbq = linear(h, h); cwk, cbk = linear(h, h); cwv, cbv = linear(h, h)
    cwo, cbo = linear(h, h); g2, be2 = layer_norm_params(h)
    w1, b1 = linear(h, i); w2, b2 = linear(i, h); g3, be3 = layer_norm_params(h)
    return {
        "self": {"wq": wq, "bq": bq, "wk": wk, "bk": bk, "wv": wv, "bv": bv},
        "self_out": {"w": wo, "b": bo, "gamma": g1, "beta": be1},
        "cross": {"wq": cwq, "bq": cbq, "wk": cwk, "bk": cbk, "wv": cwv, "bv": cbv},
        "cross_out": {"w": cwo, "b": cbo, "gamma": g2, "beta": be2},
        "ffn": {"w1": w1, "b1": b1, "w2": w2, "b2": b2, "gamma": g3, "beta": be3},
    }


# --------------------------------------------------------------------------- #
# test
# --------------------------------------------------------------------------- #
if __name__ == "__main__":
    batch, seq, hidden, num_heads = 2, 8, 32, 4
    intermediate = 128
    video_len = 16
    eps = 1e-12

    root = jax.random.PRNGKey(0)
    k_h, k_v, k_p = jax.random.split(root, 3)
    hidden_states = jax.random.normal(k_h, (batch, seq, hidden), jnp.float32)
    video_feat = jax.random.normal(k_v, (batch, video_len, hidden), jnp.float32)

    # additive BERT-style masks (0 = attend, -1e4 = masked)
    text_lens = jnp.array([seq, seq - 2])
    attention_mask = jnp.where(jnp.arange(seq)[None, :] < text_lens[:, None], 0.0, -1e4)
    attention_mask = attention_mask.reshape(batch, 1, 1, seq).astype(jnp.float32)
    video_lens = jnp.array([video_len, video_len - 4])
    cross_mask = jnp.where(jnp.arange(video_len)[None, :] < video_lens[:, None], 0.0, -1e4)
    cross_mask = cross_mask.reshape(batch, 1, 1, video_len).astype(jnp.float32)

    params = init_bert_layer_params(k_p, hidden, intermediate)

    ref = bert_layer_reference(params, hidden_states, attention_mask, video_feat,
                               cross_mask, num_heads=num_heads, eps=eps)

    # f32 compute path: tight check against the PyTorch-equivalent reference.
    prep_f32 = prepare_bert_layer_params(params, num_heads, compute_dtype=jnp.float32)
    out_f32 = bert_layer_forward(prep_f32, hidden_states, attention_mask, video_feat,
                                 cross_mask, num_heads=num_heads, eps=eps)
    out_f32 = jax.block_until_ready(out_f32)
    assert out_f32.shape == (batch, seq, hidden)
    err_f32 = float(jnp.max(jnp.abs(out_f32.astype(jnp.float32) - ref)))
    assert err_f32 < 1e-3, f"f32 path mismatch vs reference: max abs err {err_f32}"

    # bf16 compute path (bf16 MXU operands & residual stream, f32 accumulation/LN): loose check.
    prep_bf16 = prepare_bert_layer_params(params, num_heads, compute_dtype=jnp.bfloat16)
    out_bf16 = bert_layer_forward(prep_bf16, hidden_states, attention_mask, video_feat,
                                  cross_mask, num_heads=num_heads, eps=eps)
    out_bf16 = jax.block_until_ready(out_bf16).astype(jnp.float32)
    err_bf16 = float(jnp.max(jnp.abs(out_bf16 - ref)))
    assert err_bf16 < 0.15, f"bf16 path mismatch vs reference: max abs err {err_bf16}"

    print("KERNEL_OK")
</pallas_src>

<mosaic_0001>
module attributes {stable_mosaic.version = 11 : i64} {
  func.func @_probe_kernel(%arg0: i32, %arg1: memref<8x128xf32, #tpu.memory_space<vmem>>, %arg2: memref<8x128xf32, #tpu.memory_space<vmem>>) attributes {dimension_semantics = [#tpu.dimension_semantics<arbitrary>], iteration_bounds = array<i64: 2>, scalar_prefetch = 0 : i64, scratch_operands = 0 : i64, tpu.core_type = #tpu.core_type<tc>, window_params = [{pipeline_mode = #tpu.pipeline_mode<synchronous>, transform_indices = @transform_0, window_bounds = array<i64: 8, 128>}, {pipeline_mode = #tpu.pipeline_mode<synchronous>, transform_indices = @transform_1, window_bounds = array<i64: 8, 128>}]} {
    %c0 = arith.constant 0 : index
    %c0_0 = arith.constant 0 : index
    %0 = vector.load %arg1[%c0, %c0_0] : memref<8x128xf32, #tpu.memory_space<vmem>>, vector<8x128xf32>
    %cst = arith.constant 1.000000e+00 : f32
    %1 = vector.broadcast %cst : f32 to vector<8x128xf32>
    %2 = arith.addf %0, %1 : vector<8x128xf32>
    %c0_1 = arith.constant 0 : index
    %c0_2 = arith.constant 0 : index
    %3 = vector.load %arg2[%c0_1, %c0_2] : memref<8x128xf32, #tpu.memory_space<vmem>>, vector<8x128xf32>
    tpu.vector_store %arg2[%c0_1, %c0_2], %2 {strides = array<i32>} : memref<8x128xf32, #tpu.memory_space<vmem>>, vector<8x128xf32>,
    return
  }
  func.func @transform_0(%arg0: i32) -> (i32, i32) {
    %c0_i32 = arith.constant 0 : i32
    %c0_i32_0 = arith.constant 0 : i32
    %c0_i32_1 = arith.constant 0 : i32
    return %c0_i32, %c0_i32_0 : i32, i32
  }
  func.func @transform_1(%arg0: i32) -> (i32, i32) {
    %c0_i32 = arith.constant 0 : i32
    %c0_i32_0 = arith.constant 0 : i32
    %c0_i32_1 = arith.constant 0 : i32
    return %c0_i32, %c0_i32_0 : i32, i32
  }
}

module attributes {stable_mosaic.version = 11 : i64} {
  func.func @_dense_kernel(%arg0: i32, %arg1: memref<16x32xf32, #tpu.memory_space<vmem>>, %arg2: memref<32x96xf32, #tpu.memory_space<vmem>>, %arg3: memref<1x96xf32, #tpu.memory_space<vmem>>, %arg4: memref<16x96xf32, #tpu.memory_space<vmem>>) attributes {dimension_semantics = [#tpu.dimension_semantics<parallel>], iteration_bounds = array<i64: 1>, scalar_prefetch = 0 : i64, scratch_operands = 0 : i64, tpu.core_type = #tpu.core_type<tc>, window_params = [{transform_indices = @transform_0, window_bounds = array<i64: 16, 32>}, {pipeline_mode = #tpu.pipeline_mode<synchronous>, transform_indices = @transform_1, window_bounds = array<i64: 32, 96>}, {pipeline_mode = #tpu.pipeline_mode<synchronous>, transform_indices = @transform_2, window_bounds = array<i64: 1, 96>}, {transform_indices = @transform_3, window_bounds = array<i64: 16, 96>}]} {
    %c0 = arith.constant 0 : index
    %c0_0 = arith.constant 0 : index
    %0 = vector.load %arg1[%c0, %c0_0] : memref<16x32xf32, #tpu.memory_space<vmem>>, vector<16x32xf32>
    %c0_1 = arith.constant 0 : index
    %c0_2 = arith.constant 0 : index
    %1 = vector.load %arg2[%c0_1, %c0_2] : memref<32x96xf32, #tpu.memory_space<vmem>>, vector<32x96xf32>
    %cst = arith.constant dense<0.000000e+00> : vector<16x96xf32>
    %2 = tpu.matmul %0, %1, %cst {dimension_numbers = #tpu.dot_dimension_numbers<[1], [0], [0], [1], [0, 0, 1, 1], [], []>} : vector<16x32xf32>, vector<32x96xf32>, vector<16x96xf32> -> vector<16x96xf32>
    %c0_3 = arith.constant 0 : index
    %c0_4 = arith.constant 0 : index
    %3 = vector.load %arg3[%c0_3, %c0_4] : memref<1x96xf32, #tpu.memory_space<vmem>>, vector<1x96xf32>
    %4 = vector.broadcast %3 : vector<1x96xf32> to vector<16x96xf32>
    %5 = arith.addf %2, %4 : vector<16x96xf32>
    %c0_5 = arith.constant 0 : index
    %c0_6 = arith.constant 0 : index
    %6 = vector.load %arg4[%c0_5, %c0_6] : memref<16x96xf32, #tpu.memory_space<vmem>>, vector<16x96xf32>
    tpu.vector_store %arg4[%c0_5, %c0_6], %5 {strides = array<i32>} : memref<16x96xf32, #tpu.memory_space<vmem>>, vector<16x96xf32>,
    return
  }
  func.func @transform_0(%arg0: i32) -> (i32, i32) {
    %c0_i32 = arith.constant 0 : i32
    %c0_i32_0 = arith.constant 0 : i32
    return %arg0, %c0_i32 : i32, i32
  }
  func.func @transform_1(%arg0: i32) -> (i32, i32) {
    %c0_i32 = arith.constant 0 : i32
    %c0_i32_0 = arith.constant 0 : i32
    %c0_i32_1 = arith.constant 0 : i32
    return %c0_i32, %c0_i32_0 : i32, i32
  }
  func.func @transform_2(%arg0: i32) -> (i32, i32) {
    %c0_i32 = arith.constant 0 : i32
    %c0_i32_0 = arith.constant 0 : i32
    %c0_i32_1 = arith.constant 0 : i32
    return %c0_i32, %c0_i32_0 : i32, i32
  }
  func.func @transform_3(%arg0: i32) -> (i32, i32) {
    %c0_i32 = arith.constant 0 : i32
    %c0_i32_0 = arith.constant 0 : i32
    return %arg0, %c0_i32 : i32, i32
  }
}

</mosaic_0001>

<llo_original>
// kernel: tpu_custom_call.1
$region0: #{tpu_custom_call.1}
  #allocation0 [shape = 'u32[]', space=smem, size = 0x4, offset = 0x4, fixed_abs, tag = 'smem constant byte address 0x4 - core index']
  #allocation1 [shape = 'u32[144,128]{1,0:T(1,128)}', space=vmem, size = 0x12000, scoped, tag = 'internal scratch']
  %s0 = inlined_call_operand.hbm [shape: f32[8,128], index: 0, kind: input, shape index: {}]
  %s1 = inlined_call_operand.hbm [shape: f32[8,128], index: 1, kind: output, shape index: {}]
  %s2 = sld [smem:[#allocation0]]
  $region41: #{tpu_custom_call.1} parent=0
    _
  %s4 = ssub.s32 1, %s2
  %s5 = scalar_select 0, %s4, %s2
  $region1: #{tpu_custom_call.1} parent=0
    #allocation2 [shape = 'u8[4096]{0}', space=vmem, size = 0x1000, scoped, tag = 'input window, operand 0, single buffered']
    #allocation3 [shape = 's32[2]{0}', space=sflag, size = 0x8, scoped, tag = 'scoped memory for tpu_custom_call.1']
    #allocation4 [shape = 's32[2]{0}', space=sflag, size = 0x8, scoped, tag = 'scoped memory for tpu_custom_call.1']
    #allocation5 [shape = 'u8[4096]{0}', space=vmem, size = 0x1000, scoped, tag = 'output window, operand 0, single buffered']
    %6 = vsyncpa [#allocation3], 0
    %7 = vsyncpa [#allocation4], 0
    loop: start=0, step=1, limit=4
    $region2: #{tpu_custom_call.1} parent=1 // loop_pre_header
      _
    $region3: #{tpu_custom_call.1} parent=1 // loop_header
      %s9 = sphi 0, %s13
      %p10 = scmp.ge.s32.totalorder %s9, 4
      %s17 = sphi 0, %s17
      %s19 = sphi 0, %s17
      %s20 = sphi 0, %s19
      %s34 = sphi 0, %s20
      %s38 = sphi 0, %s38
      %s40 = sphi 0, %s38
      %s41 = sphi 0, %s40
      %s55 = sphi 0, %s41
    $region4: #{tpu_custom_call.1} parent=1 // loop_header_branch
      %12 = sbr.rel (%p10) target = $region8
    $region5: #{tpu_custom_call.1} parent=1 // loop_body
      %s14 = ssub.s32 %s9, 1
      %s15 = ssub.s32 %s9, 2
      %s16 = sadd.s32 %s9, 1
      %s18 = sadd.s32 %s17, 1
      %p21 = scmp.eq.s32.totalorder %s9, 1
      %p22 = scmp.ne.s32.totalorder %s17, %s19
      %p23 = scmp.eq.s32.totalorder %s9, 0
      %p24 = por %p22, %p23
      %p25 = scmp.ne.s32.totalorder %s17, %s19
      %p26 = scmp.eq.s32.totalorder %s14, 1
      %p27 = por %p25, %p26
      %p28 = scmp.ne.s32.totalorder %s19, %s20
      %p29 = scmp.eq.s32.totalorder %s14, 0
      %p30 = por %p28, %p29
      %p31 = scmp.ne.s32.totalorder %s19, %s20
      %p32 = scmp.eq.s32.totalorder %s15, 1
      %p33 = por %p31, %p32
      %p35 = scmp.ne.s32.totalorder %s20, %s34
      %p36 = scmp.eq.s32.totalorder %s15, 0
      %p37 = por %p35, %p36
      %s39 = sadd.s32 %s38, 1
      %p42 = scmp.eq.s32.totalorder %s9, 1
      %p43 = scmp.ne.s32.totalorder %s38, %s40
      %p44 = scmp.eq.s32.totalorder %s9, 0
      %p45 = por %p43, %p44
      %p46 = scmp.ne.s32.totalorder %s38, %s40
      %p47 = scmp.eq.s32.totalorder %s14, 1
      %p48 = por %p46, %p47
      %p49 = scmp.ne.s32.totalorder %s40, %s41
      %p50 = scmp.eq.s32.totalorder %s14, 0
      %p51 = por %p49, %p50
      %p52 = scmp.ne.s32.totalorder %s40, %s41
      %p53 = scmp.eq.s32.totalorder %s15, 1
      %p54 = por %p52, %p53
      %p56 = scmp.ne.s32.totalorder %s41, %s55
      %p57 = scmp.eq.s32.totalorder %s15, 0
      %p58 = por %p56, %p57
      %p59 = scmp.le.s32.totalorder 1, %s9
      %p60 = scmp.lt.s32.totalorder %s9, 3
      %p61 = pnand %p59, %p60
      %p62 = pneg %p61
      // Predicated region
      $region9: #{tpu_custom_call.1} parent=5 // pred_check
        _
      $region10: #{tpu_custom_call.1} parent=5 // pred_check_branch
        %64 = sbr.rel (%p61) target = $region12
      $region11: #{tpu_custom_call.1} parent=5 // pred_region
        %s65 = ssub.s32 %s9, 1
        // Predicated region
        $region13: #{tpu_custom_call.1} parent=11 // pred_check
          %p66 = pneg %p30
        $region14: #{tpu_custom_call.1} parent=11 // pred_check_branch
          %68 = sbr.rel (%p66) target = $region16
        $region15: #{tpu_custom_call.1} parent=11 // pred_region
          %s70 = ssub.s32 128, 128
          %71 = vsyncadd [#allocation3], %s70
          %s73 = sshll.u32 [#allocation2], 4
          %s74 = int_to_ptr.vmem [resolvable:$true] %s73
          %76 = dma.hbm_to_vmem [thread:$0]  %s0, 128, %s74, [#allocation3]
        $region16: #{tpu_custom_call.1} parent=11 // pred_fallthru
          _
      $region12: #{tpu_custom_call.1} parent=5 // pred_fallthru
        _
      %p77 = scmp.lt.s32.totalorder %s9, 2
      // Predicated region
      $region17: #{tpu_custom_call.1} parent=5 // pred_check
        %p78 = pneg %p77
      $region18: #{tpu_custom_call.1} parent=5 // pred_check_branch
        %80 = sbr.rel (%p78) target = $region20
      $region19: #{tpu_custom_call.1} parent=5 // pred_region
        _
      $region20: #{tpu_custom_call.1} parent=5 // pred_fallthru
        _
      %p81 = scmp.le.s32.totalorder 1, %s9
      %p82 = scmp.lt.s32.totalorder %s9, 3
      %p83 = pnand %p81, %p82
      %p84 = pneg %p83
      // Predicated region
      $region21: #{tpu_custom_call.1} parent=5 // pred_check
        _
      $region22: #{tpu_custom_call.1} parent=5 // pred_check_branch
        %86 = sbr.rel (%p83) target = $region24
      $region23: #{tpu_custom_call.1} parent=5 // pred_region
        %s87 = ssub.s32 %s9, 1
        // Predicated region
        $region25: #{tpu_custom_call.1} parent=23 // pred_check
          %p88 = pneg %p30
        $region26: #{tpu_custom_call.1} parent=23 // pred_check_branch
          %90 = sbr.rel (%p88) target = $region28
        $region27: #{tpu_custom_call.1} parent=23 // pred_region
          %91 = dma.done [#allocation3], 128
        $region28: #{tpu_custom_call.1} parent=23 // pred_fallthru
          _
        %p92 = pneg %p30
        %p93 = pneg %p27
        %p94 = pneg %p51
        %p95 = pneg %p48
        %v96 = vld [vmem:[#allocation2] sm:$0xff]
        %v97 = vadd.f32 %v96, 1.0
        %98 = vst [vmem:[#allocation5] sm:$0xff] %v97
        // Predicated region
        $region29: #{tpu_custom_call.1} parent=23 // pred_check
          %p99 = pneg %p48
        $region30: #{tpu_custom_call.1} parent=23 // pred_check_branch
          %101 = sbr.rel (%p99) target = $region32
        $region31: #{tpu_custom_call.1} parent=23 // pred_region
          %s103 = ssub.s32 128, 128
          %104 = vsyncadd [#allocation4], %s103
          %s106 = sshll.u32 [#allocation5], 4
          %s107 = int_to_ptr.vmem [resolvable:$true] %s106
          %109 = dma.vmem_to_hbm [thread:$0]  %s107, 128, %s1, [#allocation4]
        $region32: #{tpu_custom_call.1} parent=23 // pred_fallthru
          _
        // Predicated region
        $region33: #{tpu_custom_call.1} parent=23 // pred_check
          %p110 = pneg %p48
        $region34: #{tpu_custom_call.1} parent=23 // pred_check_branch
          %112 = sbr.rel (%p110) target = $region36
        $region35: #{tpu_custom_call.1} parent=23 // pred_region
          %113 = dma.done [#allocation4], 128
        $region36: #{tpu_custom_call.1} parent=23 // pred_fallthru
          _
      $region24: #{tpu_custom_call.1} parent=5 // pred_fallthru
        _
      %p114 = scmp.le.s32.totalorder 2, %s9
      // Predicated region
      $region37: #{tpu_custom_call.1} parent=5 // pred_check
        %p115 = pneg %p114
      $region38: #{tpu_custom_call.1} parent=5 // pred_check_branch
        %117 = sbr.rel (%p115) target = $region40
      $region39: #{tpu_custom_call.1} parent=5 // pred_region
        %s118 = ssub.s32 %s9, 2
      $region40: #{tpu_custom_call.1} parent=5 // pred_fallthru
        _
    $region6: #{tpu_custom_call.1} parent=1 // loop_footer
      %s13 = sadd.s32 1, %s9
    $region7: #{tpu_custom_call.1} parent=1 // loop_footer_branch
      %8 = sbr.rel target = $region3
    $region8: #{tpu_custom_call.1} parent=1 // loop_exit
      _
    %119 = vsyncpa [#allocation3], 1
    %s120 = scalar_lea.sflag [#allocation3], 1
    %121 = vsyncpa %s120, 1
    %122 = vsyncpa [#allocation4], 1
    %s123 = scalar_lea.sflag [#allocation4], 1
    %124 = vsyncpa %s123, 1

// kernel: tpu_custom_call.1
$region0: #{tpu_custom_call.1}
  #allocation0 [shape = 'u32[]', space=smem, size = 0x4, offset = 0x4, fixed_abs, tag = 'smem constant byte address 0x4 - core index']
  #allocation1 [shape = 'u32[144,128]{1,0:T(1,128)}', space=vmem, size = 0x12000, scoped, tag = 'internal scratch']
  %s0 = inlined_call_operand.hbm [shape: f32[16,32], index: 0, kind: input, shape index: {}]
  %s1 = inlined_call_operand.hbm [shape: f32[32,96], index: 1, kind: input, shape index: {}]
  %s2 = inlined_call_operand.vmem [shape: f32[1,96], index: 2, kind: input, shape index: {}]
  %s3 = inlined_call_operand.hbm [shape: f32[16,96], index: 3, kind: output, shape index: {}]
  %s4 = sld [smem:[#allocation0]]
  $region30: #{tpu_custom_call.1} parent=0
    _
  %s6 = ssub.s32 1, %s4
  %s7 = scalar_select 0, %s6, %s4
  $region1: #{tpu_custom_call.1} parent=0
    #allocation2 [shape = 'u8[8192]{0}', space=vmem, size = 0x2000, scoped, tag = 'input window, operand 0, single buffered']
    #allocation3 [shape = 's32[1]{0}', space=sflag, size = 0x4, scoped, tag = 'scoped memory for tpu_custom_call.1']
    #allocation4 [shape = 's32[1]{0}', space=sflag, size = 0x4, scoped, tag = 'scoped memory for tpu_custom_call.1']
    #allocation5 [shape = 'u8[16384]{0}', space=vmem, size = 0x4000, scoped, tag = 'input window, operand 1, single buffered']
    #allocation6 [shape = 's32[1]{0}', space=sflag, size = 0x4, scoped, tag = 'scoped memory for tpu_custom_call.1']
    #allocation7 [shape = 'u8[8192]{0}', space=vmem, size = 0x2000, scoped, tag = 'output window, operand 0, single buffered']
    %8 = vsyncpa [#allocation3], 0
    %9 = vsyncpa [#allocation6], 0
    %10 = vsyncpa [#allocation4], 0
    // Predicated region
    $region2: #{tpu_custom_call.1} parent=1 // pred_check
      _
    $region3: #{tpu_custom_call.1} parent=1 // pred_check_branch
      %12 = sbr.rel (0) target = $region5
    $region4: #{tpu_custom_call.1} parent=1 // pred_region
      %s14 = ssub.s32 256, 256
      %15 = vsyncadd [#allocation3], %s14
      %s16 = sshll.u32 [#allocation2], 4
      %s17 = int_to_ptr.vmem [resolvable:$true] %s16
      %22 = dma.hbm_to_vmem [thread:$0]  %s0, 256, %s17, [#allocation3], 128, 128, 8
    $region5: #{tpu_custom_call.1} parent=1 // pred_fallthru
      _
    // Predicated region
    $region6: #{tpu_custom_call.1} parent=1 // pred_check
      _
    $region7: #{tpu_custom_call.1} parent=1 // pred_check_branch
      %24 = sbr.rel (0) target = $region9
    $region8: #{tpu_custom_call.1} parent=1 // pred_region
      %s26 = ssub.s32 512, 512
      %27 = vsyncadd [#allocation6], %s26
      %s28 = sshll.u32 [#allocation5], 4
      %s29 = int_to_ptr.vmem [resolvable:$true] %s28
      %34 = dma.hbm_to_vmem [thread:$0]  %s1, 512, %s29, [#allocation6], 128, 128, 8
    $region9: #{tpu_custom_call.1} parent=1 // pred_fallthru
      _
    // Predicated region
    $region10: #{tpu_custom_call.1} parent=1 // pred_check
      _
    $region11: #{tpu_custom_call.1} parent=1 // pred_check_branch
      %36 = sbr.rel (0) target = $region13
    $region12: #{tpu_custom_call.1} parent=1 // pred_region
      _
    $region13: #{tpu_custom_call.1} parent=1 // pred_fallthru
      _
    // Predicated region
    $region14: #{tpu_custom_call.1} parent=1 // pred_check
      _
    $region15: #{tpu_custom_call.1} parent=1 // pred_check_branch
      %38 = sbr.rel (0) target = $region17
    $region16: #{tpu_custom_call.1} parent=1 // pred_region
      %39 = dma.done [#allocation3], 256
    $region17: #{tpu_custom_call.1} parent=1 // pred_fallthru
      _
    // Predicated region
    $region18: #{tpu_custom_call.1} parent=1 // pred_check
      _
    $region19: #{tpu_custom_call.1} parent=1 // pred_check_branch
      %41 = sbr.rel (0) target = $region21
    $region20: #{tpu_custom_call.1} parent=1 // pred_region
      %42 = dma.done [#allocation6], 512
    $region21: #{tpu_custom_call.1} parent=1 // pred_fallthru
      _
    %v43 = vld [vmem:[#allocation2] sm:$0xff]
    %v44 = vld [vmem:[#allocation2 + $0x8] sm:$0xff]
    %v45 = vld [vmem:[#allocation5] sm:$0xff]
    %v46 = vld [vmem:[#allocation5 + $0x8] sm:$0xff]
    %v47 = vld [vmem:[#allocation5 + $0x10] sm:$0xff]
    %v48 = vld [vmem:[#allocation5 + $0x18] sm:$0xff]
    %v49 = vld [vmem:[%s2] sm:$0x1]
    %v51 = vlaneseq
    %v52 = vshrl.u32 %v51, 7
    %v53 = vsub.s32 0, %v52
    %v54 = vrot.slane %v49, %v53
    %vm56 = vcmask 261120
    %v58 = vsel %vm56, %v43, 0
    %v61 = vsel %vm56, %v44, 0
    %63 = vmatprep.subr.mxu0 0.0
    %64 = vmatpush1.msra.mxu0 0.0
    %65 = vmatprep.subr.mxu0 0.0
    %66 = vmatpush1.msra.mxu0 0.0
    %67 = vmatprep.subr.mxu0 0.0
    %68 = vmatpush1.msra.mxu0 0.0
    %69 = vmatprep.subr.mxu0 0.0
    %70 = vmatpush1.msra.mxu0 0.0
    %71 = vmatprep.subr.mxu0 0.0
    %72 = vmatpush1.msra.mxu0 0.0
    %73 = vmatprep.subr.mxu0 0.0
    %74 = vmatpush1.msra.mxu0 0.0
    %75 = vmatprep.subr.mxu0 0.0
    %76 = vmatpush1.msra.mxu0 0.0
    %77 = vmatprep.subr.mxu0 0.0
    %78 = vmatpush1.msra.mxu0 0.0
    %79 = vmatprep.subr.mxu0 0.0
    %80 = vmatpush1.msra.mxu0 0.0
    %81 = vmatprep.subr.mxu0 0.0
    %82 = vmatpush1.msra.mxu0 0.0
    %83 = vmatprep.subr.mxu0 0.0
    %84 = vmatpush1.msra.mxu0 0.0
    %85 = vmatprep.subr.mxu0 0.0
    %86 = vmatpush1.msra.mxu0 0.0
    %87 = vmatprep.subr.mxu0 0.0
    %88 = vmatpush1.msra.mxu0 %v48
    %89 = vmatprep.subr.mxu0 0.0
    %90 = vmatpush1.msra.mxu0 %v47
    %91 = vmatprep.subr.mxu0 0.0
    %92 = vmatpush1.msra.mxu0 %v46
    %93 = vmatprep.subr.mxu0 0.0
    %94 = vmatpush1.msra.mxu0 %v45
    %95 = vmatprep.subr.mxu0 0.0
    %96 = vmatpush2.msra.mxu0 0.0
    %97 = vmatprep.subr.mxu0 0.0
    %98 = vmatpush2.msra.mxu0 0.0
    %99 = vmatprep.subr.mxu0 0.0
    %100 = vmatpush2.msra.mxu0 0.0
    %101 = vmatprep.subr.mxu0 0.0
    %102 = vmatpush2.msra.mxu0 0.0
    %103 = vmatprep.subr.mxu0 0.0
    %104 = vmatpush2.msra.mxu0 0.0
    %105 = vmatprep.subr.mxu0 0.0
    %106 = vmatpush2.msra.mxu0 0.0
    %107 = vmatprep.subr.mxu0 0.0
    %108 = vmatpush2.msra.mxu0 0.0
    %109 = vmatprep.subr.mxu0 0.0
    %110 = vmatpush2.msra.mxu0 0.0
    %111 = vmatprep.subr.mxu0 0.0
    %112 = vmatpush2.msra.mxu0 0.0
    %113 = vmatprep.subr.mxu0 0.0
    %114 = vmatpush2.msra.mxu0 0.0
    %115 = vmatprep.subr.mxu0 0.0
    %116 = vmatpush2.msra.mxu0 0.0
    %117 = vmatprep.subr.mxu0 0.0
    %118 = vmatpush2.msra.mxu0 0.0
    %119 = vmatprep.subr.mxu0 0.0
    %120 = vmatpush2.msra.mxu0 0.0
    %121 = vmatprep.subr.mxu0 0.0
    %122 = vmatpush2.msra.mxu0 0.0
    %123 = vmatprep.subr.mxu0 0.0
    %124 = vmatpush2.msra.mxu0 0.0
    %125 = vmatprep.subr.mxu0 0.0
    %126 = vmatpush2.msra.mxu0 0.0
    %127 = vmatprep.mubr.f32.mxu0 0.0
    %128 = vmatmul.mubr.f32.gmra.mxu0 %v58
    %v129 = vpop.f32.mrf.mxu0
    %v130 = vadd.f32 %v54, %v129
    %v131 = vpop.f32.mrf.mxu0
    %132 = vmatprep.mubr.f32.mxu0 0.0
    %133 = vmatmul.mubr.f32.gmra.mxu0 %v61
    %v134 = vpop.f32.mrf.mxu0
    %v135 = vadd.f32 %v54, %v134
    %v136 = vpop.f32.mrf.mxu0
    %137 = vdwg.mxu0
    %vm138 = vcmask 785408
    %139 = vst.msk [vmem:[#allocation7] sm:$0xff] %vm138, %v130
    %140 = vst.msk [vmem:[#allocation7 + $0x8] sm:$0xff] %vm138, %v135
    // Predicated region
    $region22: #{tpu_custom_call.1} parent=1 // pred_check
      _
    $region23: #{tpu_custom_call.1} parent=1 // pred_check_branch
      %142 = sbr.rel (0) target = $region25
    $region24: #{tpu_custom_call.1} parent=1 // pred_region
      %s144 = ssub.s32 256, 256
      %145 = vsyncadd [#allocation4], %s144
      %s146 = sshll.u32 [#allocation7], 4
      %s147 = int_to_ptr.vmem [resolvable:$true] %s146
      %152 = dma.vmem_to_hbm [thread:$0]  %s147, 256, %s3, [#allocation4], 128, 128, 8
    $region25: #{tpu_custom_call.1} parent=1 // pred_fallthru
      _
    // Predicated region
    $region26: #{tpu_custom_call.1} parent=1 // pred_check
      _
    $region27: #{tpu_custom_call.1} parent=1 // pred_check_branch
      %154 = sbr.rel (0) target = $region29
    $region28: #{tpu_custom_call.1} parent=1 // pred_region
      %155 = dma.done [#allocation4], 256
    $region29: #{tpu_custom_call.1} parent=1 // pred_fallthru
      _
    %156 = vsyncpa [#allocation3], 1
    %157 = vsyncpa [#allocation6], 1
    %158 = vsyncpa [#allocation4], 1

</llo_original>
